<compile_context>
chip_gen: v7x
topology: tpu7x:2x2x1
jax: 0.10.0
libtpu: 0.0.40
codegen_flags: <defaults>
</compile_context>

<pallas_src>
import functools

import jax
import jax.numpy as jnp
from jax import lax
from jax.experimental import pallas as pl
from jax.experimental.pallas import tpu as pltpu


# ----------------------------------------------------------------------------- #
# Pallas kernel: one (Bt, C_in, H*W) block per grid step, spatial on lanes.
#   3x3 depthwise conv (9 channel-vectorized MACs) -> +shift, ReLU
#   -> 1x1 conv as an MXU matmul -> +shift, ReLU.
# BN scales are already folded into the conv weights by the wrapper.
# ----------------------------------------------------------------------------- #
def depthwise_block_kernel(x_ref, wdw_ref, b1_ref, wsep_ref, b2_ref, out_ref,
                           *, H, W, C_in, C_out, bt):
    HW = H * W

    # Hoisted halo boundary masks (shared by all taps and batch copies).
    # row bounds need no div: row >= 1  <=>  p >= W ; row <= H-2  <=>  p < (H-1)*W.
    p = lax.broadcasted_iota(jnp.int32, (1, HW), 1)        # flat spatial index
    col = p % W
    row_ok = {-1: p >= W, 1: p < (H - 1) * W}
    col_ok = {-1: col >= 1, 1: col <= W - 2}
    masks = {}
    for dy in (-1, 0, 1):
        for dx in (-1, 0, 1):
            if dy == 0 and dx == 0:
                continue
            m = row_ok[dy] if dy != 0 else None
            if dx != 0:
                m = col_ok[dx] if m is None else (m & col_ok[dx])
            masks[(dy, dx)] = m

    wdw = wdw_ref[...]     # (C_in, 9)    depthwise weights, bn_dw scale folded in
    b1 = b1_ref[...]       # (C_in, 1)    bn_dw shift
    wsep = wsep_ref[...]   # (C_out, C_in) pointwise weights, bn_sep scale folded in
    b2 = b2_ref[...]       # (C_out, 1)   bn_sep shift

    for b in range(bt):                                     # static, unrolled
        x = x_ref[b].astype(jnp.float32)                    # (C_in, HW)

        # --- 3x3 depthwise conv: 9 full-tile MACs, roll->mask->MAC fused ---
        acc = x * wdw[:, 4:5]                               # center tap: no shift/mask
        t = 0
        for dy in (-1, 0, 1):
            for dx in (-1, 0, 1):
                if dy == 0 and dx == 0:
                    t += 1
                    continue
                shift = (-(dy * W + dx)) % HW               # static lane rotate amount
                shifted = pltpu.roll(x, shift, 1)           # XLU rotate, co-issues with VPU
                acc = acc + jnp.where(masks[(dy, dx)], shifted, 0.0) * wdw[:, t:t + 1]
                t += 1
        y = jnp.maximum(acc + b1, 0.0)                      # (C_in, HW)

        # --- 1x1 pointwise conv on the MXU, + shift + ReLU ---
        o = jnp.dot(wsep, y,
                    preferred_element_type=jnp.float32,
                    precision=lax.Precision.HIGHEST)        # (C_out, HW)
        out_ref[b] = jnp.maximum(o + b2, 0.0).astype(out_ref.dtype)


def _choose_batch_tile(B, C_in):
    """Batches per grid step: fill sublanes when channels are narrow, but keep
    >= 2 grid steps whenever B allows it (v7x has 2 TensorCores)."""
    bt = max(1, 8 // max(C_in, 1))
    bt = min(bt, B)
    while bt > 1 and (B // bt) < 2:
        bt -= 1
    while bt > 1 and B % bt != 0:
        bt -= 1
    return max(bt, 1)


def depthwise_block_forward(x_nchw, w_dw, bn_dw, w_sep, bn_sep, eps=1e-5,
                            out_dtype=jnp.float32):
    """DepthWiseBlock forward pass with a Pallas TPU kernel.

    x_nchw : (B, C_in, H, W) float32
    w_dw   : (C_in, 1, 3, 3)       depthwise conv weight (torch layout)
    bn_dw  : dict(gamma, beta, mean, var) each (C_in,)
    w_sep  : (C_out, C_in, 1, 1)   pointwise conv weight (torch layout)
    bn_sep : dict(gamma, beta, mean, var) each (C_out,)
    returns: (B, C_out, H, W) in out_dtype (default float32)
    """
    B, C_in, H, W = x_nchw.shape
    C_out = w_sep.shape[0]
    HW = H * W

    def fold(bn):
        scale = bn["gamma"] / jnp.sqrt(bn["var"] + eps)
        shift = bn["beta"] - bn["mean"] * scale
        return scale.astype(jnp.float32), shift.astype(jnp.float32)

    s1, b1 = fold(bn_dw)      # (C_in,)
    s2, b2 = fold(bn_sep)     # (C_out,)

    # Fold BN scales into the conv weights (one-time host-side transform).
    # wdw2d[c, (ky*3+kx)] = w_dw[c,0,ky,kx] * s1[c]
    wdw2d = (w_dw[:, 0, :, :] * s1[:, None, None]).reshape(C_in, 9).astype(jnp.float32)
    # wsep2d[co, ci] = w_sep[co,ci,0,0] * s2[co]
    wsep2d = (w_sep[:, :, 0, 0] * s2[:, None]).astype(jnp.float32)
    b1c = b1.reshape(C_in, 1)
    b2c = b2.reshape(C_out, 1)

    # Free reshape (contiguous NCHW): spatial goes on the lane axis.
    x_flat = x_nchw.reshape(B, C_in, HW)

    bt = _choose_batch_tile(B, C_in)
    kernel = functools.partial(depthwise_block_kernel,
                               H=H, W=W, C_in=C_in, C_out=C_out, bt=bt)
    vmem = pl.BlockSpec(memory_space=pltpu.MemorySpace.VMEM)

    # TODO(synk): if B grows large, add pipeline_mode=pl.Buffered(3) on the x spec.
    out_flat = pl.pallas_call(
        kernel,
        out_shape=jax.ShapeDtypeStruct((B, C_out, HW), out_dtype),
        grid_spec=pltpu.PrefetchScalarGridSpec(
            num_scalar_prefetch=0,
            grid=(B // bt,),
            in_specs=[
                pl.BlockSpec((bt, C_in, HW), lambda b: (b, 0, 0)),  # x
                vmem,   # wdw  (C_in, 9)
                vmem,   # b1   (C_in, 1)
                vmem,   # wsep (C_out, C_in)
                vmem,   # b2   (C_out, 1)
            ],
            out_specs=pl.BlockSpec((bt, C_out, HW), lambda b: (b, 0, 0)),
        ),
        compiler_params=pltpu.CompilerParams(
            dimension_semantics=("parallel",),
            vmem_limit_bytes=32 * 1024 * 1024),
    )(x_flat, wdw2d, b1c, wsep2d, b2c)

    return out_flat.reshape(B, C_out, H, W)


# ----------------------------------------------------------------------------- #
# Pure-JAX reference (same math, via lax.conv) for a correctness check.
# ----------------------------------------------------------------------------- #
def ref_forward(x_nchw, w_dw, bn_dw, w_sep, bn_sep, eps=1e-5):
    C_in = x_nchw.shape[1]

    def bn(x, p):
        scale = (p["gamma"] / jnp.sqrt(p["var"] + eps)).reshape(1, -1, 1, 1)
        shift = (p["beta"] - p["mean"] * p["gamma"] / jnp.sqrt(p["var"] + eps)
                 ).reshape(1, -1, 1, 1)
        return x * scale + shift

    y = lax.conv_general_dilated(
        x_nchw, w_dw, window_strides=(1, 1), padding=((1, 1), (1, 1)),
        dimension_numbers=("NCHW", "OIHW", "NCHW"), feature_group_count=C_in,
        precision=lax.Precision.HIGHEST)
    y = jnp.maximum(bn(y, bn_dw), 0.0)
    y = lax.conv_general_dilated(
        y, w_sep, window_strides=(1, 1), padding=((0, 0), (0, 0)),
        dimension_numbers=("NCHW", "OIHW", "NCHW"),
        precision=lax.Precision.HIGHEST)
    y = jnp.maximum(bn(y, bn_sep), 0.0)
    return y


if __name__ == "__main__":
    # Small, module-consistent shapes: batch=2, inplanes=4, planes=8, spatial=16.
    B, C_in, C_out, H, W = 2, 4, 8, 16, 16

    key = jax.random.PRNGKey(0)
    ks = jax.random.split(key, 9)

    x = jax.random.normal(ks[0], (B, C_in, H, W), dtype=jnp.float32)

    # Deterministic synthetic parameters (shapes match nn.Conv2d / nn.BatchNorm2d).
    w_dw = 0.1 * jax.random.normal(ks[1], (C_in, 1, 3, 3), dtype=jnp.float32)
    w_sep = 0.1 * jax.random.normal(ks[2], (C_out, C_in, 1, 1), dtype=jnp.float32)
    bn_dw = {
        "gamma": 0.5 + jax.random.uniform(ks[3], (C_in,), dtype=jnp.float32),
        "beta": 0.1 * jax.random.normal(ks[4], (C_in,), dtype=jnp.float32),
        "mean": 0.1 * jax.random.normal(ks[5], (C_in,), dtype=jnp.float32),
        "var": 0.5 + jax.random.uniform(ks[6], (C_in,), dtype=jnp.float32),
    }
    bn_sep = {
        "gamma": 0.5 + jax.random.uniform(ks[7], (C_out,), dtype=jnp.float32),
        "beta": 0.1 * jax.random.normal(ks[8], (C_out,), dtype=jnp.float32),
        "mean": jnp.zeros((C_out,), jnp.float32),
        "var": jnp.ones((C_out,), jnp.float32),
    }

    out = depthwise_block_forward(x, w_dw, bn_dw, w_sep, bn_sep)
    out = jax.block_until_ready(out)

    ref = ref_forward(x, w_dw, bn_dw, w_sep, bn_sep)
    assert out.shape == (B, C_out, H, W)
    # Slightly relaxed tolerance: the 1x1 conv now runs on the MXU.
    assert jnp.allclose(out, ref, atol=2e-4, rtol=2e-4), "mismatch vs reference"

    print("KERNEL_OK")
</pallas_src>

<mosaic_0001>
module attributes {stable_mosaic.version = 11 : i64} {
  func.func @depthwise_block_kernel(%arg0: i32, %arg1: memref<1x4x256xf32, #tpu.memory_space<vmem>>, %arg2: memref<4x9xf32, #tpu.memory_space<vmem>>, %arg3: memref<4x1xf32, #tpu.memory_space<vmem>>, %arg4: memref<8x4xf32, #tpu.memory_space<vmem>>, %arg5: memref<8x1xf32, #tpu.memory_space<vmem>>, %arg6: memref<1x8x256xf32, #tpu.memory_space<vmem>>) attributes {dimension_semantics = [#tpu.dimension_semantics<parallel>], iteration_bounds = array<i64: 2>, scalar_prefetch = 0 : i64, scratch_operands = 0 : i64, tpu.core_type = #tpu.core_type<tc>, window_params = [{transform_indices = @transform_0, window_bounds = array<i64: 1, 4, 256>}, {pipeline_mode = #tpu.pipeline_mode<synchronous>, transform_indices = @transform_1, window_bounds = array<i64: 4, 9>}, {pipeline_mode = #tpu.pipeline_mode<synchronous>, transform_indices = @transform_2, window_bounds = array<i64: 4, 1>}, {pipeline_mode = #tpu.pipeline_mode<synchronous>, transform_indices = @transform_3, window_bounds = array<i64: 8, 4>}, {pipeline_mode = #tpu.pipeline_mode<synchronous>, transform_indices = @transform_4, window_bounds = array<i64: 8, 1>}, {transform_indices = @transform_5, window_bounds = array<i64: 1, 8, 256>}]} {
    %0 = tpu.iota {dimensions = array<i32: 1>} : vector<1x256xi32>
    %c16_i32 = arith.constant 16 : i32
    %c0_i32 = arith.constant 0 : i32
    %1 = arith.cmpi eq, %c16_i32, %c0_i32 : i32
    %c1_i32 = arith.constant 1 : i32
    %2 = arith.select %1, %c1_i32, %c16_i32 : i32
    %3 = vector.broadcast %2 : i32 to vector<1x256xi32>
    %4 = arith.remsi %0, %3 : vector<1x256xi32>
    %c0_i32_0 = arith.constant 0 : i32
    %5 = vector.broadcast %c0_i32_0 : i32 to vector<1x256xi32>
    %6 = arith.cmpi ne, %4, %5 : vector<1x256xi32>
    %c0_i32_1 = arith.constant 0 : i32
    %7 = vector.broadcast %c0_i32_1 : i32 to vector<1x256xi32>
    %8 = arith.cmpi slt, %4, %7 : vector<1x256xi32>
    %c0_i32_2 = arith.constant 0 : i32
    %9 = arith.cmpi slt, %2, %c0_i32_2 : i32
    %10 = vector.broadcast %9 : i1 to vector<1x256xi1>
    %11 = vector.broadcast %10 : vector<1x256xi1> to vector<1x256xi1>
    %12 = arith.xori %8, %11 : vector<1x256xi1>
    %13 = arith.andi %12, %6 : vector<1x256xi1>
    %14 = vector.broadcast %2 : i32 to vector<1x256xi32>
    %15 = arith.addi %4, %14 : vector<1x256xi32>
    %16 = arith.select %13, %15, %4 : vector<1x256xi1>, vector<1x256xi32>
    %c16_i32_3 = arith.constant 16 : i32
    %17 = vector.broadcast %c16_i32_3 : i32 to vector<1x256xi32>
    %18 = arith.cmpi sge, %0, %17 : vector<1x256xi32>
    %c240_i32 = arith.constant 240 : i32
    %19 = vector.broadcast %c240_i32 : i32 to vector<1x256xi32>
    %20 = arith.cmpi slt, %0, %19 : vector<1x256xi32>
    %c1_i32_4 = arith.constant 1 : i32
    %21 = vector.broadcast %c1_i32_4 : i32 to vector<1x256xi32>
    %22 = arith.cmpi sge, %16, %21 : vector<1x256xi32>
    %c14_i32 = arith.constant 14 : i32
    %23 = vector.broadcast %c14_i32 : i32 to vector<1x256xi32>
    %24 = arith.cmpi sle, %16, %23 : vector<1x256xi32>
    %25 = arith.andi %18, %22 : vector<1x256xi1>
    %26 = arith.andi %18, %24 : vector<1x256xi1>
    %27 = arith.andi %20, %22 : vector<1x256xi1>
    %28 = arith.andi %20, %24 : vector<1x256xi1>
    %c0 = arith.constant 0 : index
    %c0_5 = arith.constant 0 : index
    %29 = vector.load %arg2[%c0, %c0_5] : memref<4x9xf32, #tpu.memory_space<vmem>>, vector<4x9xf32>
    %c0_6 = arith.constant 0 : index
    %c0_7 = arith.constant 0 : index
    %30 = vector.load %arg3[%c0_6, %c0_7] : memref<4x1xf32, #tpu.memory_space<vmem>>, vector<4x1xf32>
    %c0_8 = arith.constant 0 : index
    %c0_9 = arith.constant 0 : index
    %31 = vector.load %arg4[%c0_8, %c0_9] : memref<8x4xf32, #tpu.memory_space<vmem>>, vector<8x4xf32>
    %c0_10 = arith.constant 0 : index
    %c0_11 = arith.constant 0 : index
    %32 = vector.load %arg5[%c0_10, %c0_11] : memref<8x1xf32, #tpu.memory_space<vmem>>, vector<8x1xf32>
    %c0_12 = arith.constant 0 : index
    %c0_13 = arith.constant 0 : index
    %c0_14 = arith.constant 0 : index
    %33 = vector.load %arg1[%c0_12, %c0_13, %c0_14] : memref<1x4x256xf32, #tpu.memory_space<vmem>>, vector<1x4x256xf32>
    %34 = vector.shape_cast %33 : vector<1x4x256xf32> to vector<4x256xf32>
    %35 = vector.extract_strided_slice %29 {offsets = [0, 4], sizes = [4, 1], strides = [1, 1]} : vector<4x9xf32> to vector<4x1xf32>
    %36 = vector.broadcast %35 : vector<4x1xf32> to vector<4x256xf32>
    %37 = arith.mulf %34, %36 : vector<4x256xf32>
    %c17_i32 = arith.constant 17 : i32
    %38 = tpu.dynamic_rotate %34 by %c17_i32 dim 1 : vector<4x256xf32>, i32 -> vector<4x256xf32>
    %cst = arith.constant 0.000000e+00 : f32
    %39 = vector.shape_cast %25 : vector<1x256xi1> to vector<1x256xi1>
    %40 = vector.broadcast %39 : vector<1x256xi1> to vector<4x256xi1>
    %41 = vector.broadcast %cst : f32 to vector<4x256xf32>
    %42 = arith.select %40, %38, %41 : vector<4x256xi1>, vector<4x256xf32>
    %43 = vector.extract_strided_slice %29 {offsets = [0, 0], sizes = [4, 1], strides = [1, 1]} : vector<4x9xf32> to vector<4x1xf32>
    %44 = vector.broadcast %43 : vector<4x1xf32> to vector<4x256xf32>
    %45 = arith.mulf %42, %44 : vector<4x256xf32>
    %46 = arith.addf %37, %45 : vector<4x256xf32>
    %c16_i32_15 = arith.constant 16 : i32
    %47 = tpu.dynamic_rotate %34 by %c16_i32_15 dim 1 : vector<4x256xf32>, i32 -> vector<4x256xf32>
    %cst_16 = arith.constant 0.000000e+00 : f32
    %48 = vector.shape_cast %18 : vector<1x256xi1> to vector<1x256xi1>
    %49 = vector.broadcast %48 : vector<1x256xi1> to vector<4x256xi1>
    %50 = vector.broadcast %cst_16 : f32 to vector<4x256xf32>
    %51 = arith.select %49, %47, %50 : vector<4x256xi1>, vector<4x256xf32>
    %52 = vector.extract_strided_slice %29 {offsets = [0, 1], sizes = [4, 1], strides = [1, 1]} : vector<4x9xf32> to vector<4x1xf32>
    %53 = vector.broadcast %52 : vector<4x1xf32> to vector<4x256xf32>
    %54 = arith.mulf %51, %53 : vector<4x256xf32>
    %55 = arith.addf %46, %54 : vector<4x256xf32>
    %c15_i32 = arith.constant 15 : i32
    %56 = tpu.dynamic_rotate %34 by %c15_i32 dim 1 : vector<4x256xf32>, i32 -> vector<4x256xf32>
    %cst_17 = arith.constant 0.000000e+00 : f32
    %57 = vector.shape_cast %26 : vector<1x256xi1> to vector<1x256xi1>
    %58 = vector.broadcast %57 : vector<1x256xi1> to vector<4x256xi1>
    %59 = vector.broadcast %cst_17 : f32 to vector<4x256xf32>
    %60 = arith.select %58, %56, %59 : vector<4x256xi1>, vector<4x256xf32>
    %61 = vector.extract_strided_slice %29 {offsets = [0, 2], sizes = [4, 1], strides = [1, 1]} : vector<4x9xf32> to vector<4x1xf32>
    %62 = vector.broadcast %61 : vector<4x1xf32> to vector<4x256xf32>
    %63 = arith.mulf %60, %62 : vector<4x256xf32>
    %64 = arith.addf %55, %63 : vector<4x256xf32>
    %c1_i32_18 = arith.constant 1 : i32
    %65 = tpu.dynamic_rotate %34 by %c1_i32_18 dim 1 : vector<4x256xf32>, i32 -> vector<4x256xf32>
    %cst_19 = arith.constant 0.000000e+00 : f32
    %66 = vector.shape_cast %22 : vector<1x256xi1> to vector<1x256xi1>
    %67 = vector.broadcast %66 : vector<1x256xi1> to vector<4x256xi1>
    %68 = vector.broadcast %cst_19 : f32 to vector<4x256xf32>
    %69 = arith.select %67, %65, %68 : vector<4x256xi1>, vector<4x256xf32>
    %70 = vector.extract_strided_slice %29 {offsets = [0, 3], sizes = [4, 1], strides = [1, 1]} : vector<4x9xf32> to vector<4x1xf32>
    %71 = vector.broadcast %70 : vector<4x1xf32> to vector<4x256xf32>
    %72 = arith.mulf %69, %71 : vector<4x256xf32>
    %73 = arith.addf %64, %72 : vector<4x256xf32>
    %c255_i32 = arith.constant 255 : i32
    %74 = tpu.dynamic_rotate %34 by %c255_i32 dim 1 : vector<4x256xf32>, i32 -> vector<4x256xf32>
    %cst_20 = arith.constant 0.000000e+00 : f32
    %75 = vector.shape_cast %24 : vector<1x256xi1> to vector<1x256xi1>
    %76 = vector.broadcast %75 : vector<1x256xi1> to vector<4x256xi1>
    %77 = vector.broadcast %cst_20 : f32 to vector<4x256xf32>
    %78 = arith.select %76, %74, %77 : vector<4x256xi1>, vector<4x256xf32>
    %79 = vector.extract_strided_slice %29 {offsets = [0, 5], sizes = [4, 1], strides = [1, 1]} : vector<4x9xf32> to vector<4x1xf32>
    %80 = vector.broadcast %79 : vector<4x1xf32> to vector<4x256xf32>
    %81 = arith.mulf %78, %80 : vector<4x256xf32>
    %82 = arith.addf %73, %81 : vector<4x256xf32>
    %c241_i32 = arith.constant 241 : i32
    %83 = tpu.dynamic_rotate %34 by %c241_i32 dim 1 : vector<4x256xf32>, i32 -> vector<4x256xf32>
    %cst_21 = arith.constant 0.000000e+00 : f32
    %84 = vector.shape_cast %27 : vector<1x256xi1> to vector<1x256xi1>
    %85 = vector.broadcast %84 : vector<1x256xi1> to vector<4x256xi1>
    %86 = vector.broadcast %cst_21 : f32 to vector<4x256xf32>
    %87 = arith.select %85, %83, %86 : vector<4x256xi1>, vector<4x256xf32>
    %88 = vector.extract_strided_slice %29 {offsets = [0, 6], sizes = [4, 1], strides = [1, 1]} : vector<4x9xf32> to vector<4x1xf32>
    %89 = vector.broadcast %88 : vector<4x1xf32> to vector<4x256xf32>
    %90 = arith.mulf %87, %89 : vector<4x256xf32>
    %91 = arith.addf %82, %90 : vector<4x256xf32>
    %c240_i32_22 = arith.constant 240 : i32
    %92 = tpu.dynamic_rotate %34 by %c240_i32_22 dim 1 : vector<4x256xf32>, i32 -> vector<4x256xf32>
    %cst_23 = arith.constant 0.000000e+00 : f32
    %93 = vector.shape_cast %20 : vector<1x256xi1> to vector<1x256xi1>
    %94 = vector.broadcast %93 : vector<1x256xi1> to vector<4x256xi1>
    %95 = vector.broadcast %cst_23 : f32 to vector<4x256xf32>
    %96 = arith.select %94, %92, %95 : vector<4x256xi1>, vector<4x256xf32>
    %97 = vector.extract_strided_slice %29 {offsets = [0, 7], sizes = [4, 1], strides = [1, 1]} : vector<4x9xf32> to vector<4x1xf32>
    %98 = vector.broadcast %97 : vector<4x1xf32> to vector<4x256xf32>
    %99 = arith.mulf %96, %98 : vector<4x256xf32>
    %100 = arith.addf %91, %99 : vector<4x256xf32>
    %c239_i32 = arith.constant 239 : i32
    %101 = tpu.dynamic_rotate %34 by %c239_i32 dim 1 : vector<4x256xf32>, i32 -> vector<4x256xf32>
    %cst_24 = arith.constant 0.000000e+00 : f32
    %102 = vector.shape_cast %28 : vector<1x256xi1> to vector<1x256xi1>
    %103 = vector.broadcast %102 : vector<1x256xi1> to vector<4x256xi1>
    %104 = vector.broadcast %cst_24 : f32 to vector<4x256xf32>
    %105 = arith.select %103, %101, %104 : vector<4x256xi1>, vector<4x256xf32>
    %106 = vector.extract_strided_slice %29 {offsets = [0, 8], sizes = [4, 1], strides = [1, 1]} : vector<4x9xf32> to vector<4x1xf32>
    %107 = vector.broadcast %106 : vector<4x1xf32> to vector<4x256xf32>
    %108 = arith.mulf %105, %107 : vector<4x256xf32>
    %109 = arith.addf %100, %108 : vector<4x256xf32>
    %110 = vector.broadcast %30 : vector<4x1xf32> to vector<4x256xf32>
    %111 = arith.addf %109, %110 : vector<4x256xf32>
    %cst_25 = arith.constant 0.000000e+00 : f32
    %112 = vector.broadcast %cst_25 : f32 to vector<4x256xf32>
    %113 = arith.maximumf %111, %112 : vector<4x256xf32>
    %cst_26 = arith.constant dense<0.000000e+00> : vector<8x256xf32>
    %114 = tpu.matmul %31, %113, %cst_26 {dimension_numbers = #tpu.dot_dimension_numbers<[1], [0], [0], [1], [0, 0, 1, 1], [], []>, precision = #tpu.contract_precision<fp32>} : vector<8x4xf32>, vector<4x256xf32>, vector<8x256xf32> -> vector<8x256xf32>
    %115 = vector.broadcast %32 : vector<8x1xf32> to vector<8x256xf32>
    %116 = arith.addf %114, %115 : vector<8x256xf32>
    %cst_27 = arith.constant 0.000000e+00 : f32
    %117 = vector.broadcast %cst_27 : f32 to vector<8x256xf32>
    %118 = arith.maximumf %116, %117 : vector<8x256xf32>
    %c0_28 = arith.constant 0 : index
    %c0_29 = arith.constant 0 : index
    %c0_30 = arith.constant 0 : index
    %119 = vector.load %arg6[%c0_28, %c0_29, %c0_30] : memref<1x8x256xf32, #tpu.memory_space<vmem>>, vector<1x8x256xf32>
    %120 = vector.shape_cast %119 : vector<1x8x256xf32> to vector<8x256xf32>
    %121 = vector.shape_cast %118 : vector<8x256xf32> to vector<1x8x256xf32>
    tpu.vector_store %arg6[%c0_28, %c0_29, %c0_30], %121 {strides = array<i32>} : memref<1x8x256xf32, #tpu.memory_space<vmem>>, vector<1x8x256xf32>,
    return
  }
  func.func @transform_0(%arg0: i32) -> (i32, i32, i32) {
    %c0_i32 = arith.constant 0 : i32
    %c0_i32_0 = arith.constant 0 : i32
    %c0_i32_1 = arith.constant 0 : i32
    return %arg0, %c0_i32, %c0_i32_0 : i32, i32, i32
  }
  func.func @transform_1(%arg0: i32) -> (i32, i32) {
    %c0_i32 = arith.constant 0 : i32
    %c0_i32_0 = arith.constant 0 : i32
    %c0_i32_1 = arith.constant 0 : i32
    return %c0_i32, %c0_i32_0 : i32, i32
  }
  func.func @transform_2(%arg0: i32) -> (i32, i32) {
    %c0_i32 = arith.constant 0 : i32
    %c0_i32_0 = arith.constant 0 : i32
    %c0_i32_1 = arith.constant 0 : i32
    return %c0_i32, %c0_i32_0 : i32, i32
  }
  func.func @transform_3(%arg0: i32) -> (i32, i32) {
    %c0_i32 = arith.constant 0 : i32
    %c0_i32_0 = arith.constant 0 : i32
    %c0_i32_1 = arith.constant 0 : i32
    return %c0_i32, %c0_i32_0 : i32, i32
  }
  func.func @transform_4(%arg0: i32) -> (i32, i32) {
    %c0_i32 = arith.constant 0 : i32
    %c0_i32_0 = arith.constant 0 : i32
    %c0_i32_1 = arith.constant 0 : i32
    return %c0_i32, %c0_i32_0 : i32, i32
  }
  func.func @transform_5(%arg0: i32) -> (i32, i32, i32) {
    %c0_i32 = arith.constant 0 : i32
    %c0_i32_0 = arith.constant 0 : i32
    %c0_i32_1 = arith.constant 0 : i32
    return %arg0, %c0_i32, %c0_i32_0 : i32, i32, i32
  }
}

</mosaic_0001>

<llo_original>
// kernel: tpu_custom_call.1
$region0: #{tpu_custom_call.1}
  #allocation0 [shape = 'u32[]', space=smem, size = 0x4, offset = 0x4, fixed_abs, tag = 'smem constant byte address 0x4 - core index']
  #allocation1 [shape = 'u32[144,128]{1,0:T(1,128)}', space=vmem, size = 0x12000, scoped, tag = 'internal scratch']
  %s0 = inlined_call_operand.vmem [shape: f32[2,4,256], index: 0, kind: input, shape index: {}]
  %s1 = inlined_call_operand.vmem [shape: f32[4,9], index: 1, kind: input, shape index: {}]
  %s2 = inlined_call_operand.vmem [shape: f32[4,1], index: 2, kind: input, shape index: {}]
  %s3 = inlined_call_operand.vmem [shape: f32[8,4], index: 3, kind: input, shape index: {}]
  %s4 = inlined_call_operand.vmem [shape: f32[8,1], index: 4, kind: input, shape index: {}]
  %s5 = inlined_call_operand.hbm [shape: f32[2,8,256], index: 5, kind: output, shape index: {}]
  %s6 = sld [smem:[#allocation0]]
  $region53: #{tpu_custom_call.1} parent=0
    _
  %s8 = ssub.s32 1, %s6
  %s9 = scalar_select 0, %s8, %s6
  $region1: #{tpu_custom_call.1} parent=0
    #allocation2 [shape = 'u8[16384]{0}', space=vmem, size = 0x4000, scoped, tag = 'output window, operand 0']
    #allocation3 [shape = 's32[2]{0}', space=sflag, size = 0x8, scoped, tag = 'scoped memory for tpu_custom_call.1']
    %10 = vsyncpa [#allocation3], 0
    %s11 = scalar_lea.sflag [#allocation3], 1
    %12 = vsyncpa %s11, 0
    loop: start=0, step=1, limit=4
    $region2: #{tpu_custom_call.1} parent=1 // loop_pre_header
      _
    $region3: #{tpu_custom_call.1} parent=1 // loop_header
      %s14 = sphi 0, %s18
      %p15 = scmp.ge.s32.totalorder %s14, 4
      %s24 = sphi 0, %s26
      %s27 = sphi 0, %s24
      %s28 = sphi 0, %s27
      %s44 = sphi 0, %s28
      %s48 = sphi 0, %s48
      %s50 = sphi 0, %s48
      %s51 = sphi 0, %s50
      %s65 = sphi 0, %s51
      %s69 = sphi 0, %s69
      %s71 = sphi 0, %s69
      %s72 = sphi 0, %s71
      %s86 = sphi 0, %s72
      %s90 = sphi 0, %s90
      %s92 = sphi 0, %s90
      %s93 = sphi 0, %s92
      %s107 = sphi 0, %s93
      %s111 = sphi 0, %s111
      %s113 = sphi 0, %s111
      %s114 = sphi 0, %s113
      %s128 = sphi 0, %s114
      %s134 = sphi 0, %s136
      %s137 = sphi 0, %s134
      %s138 = sphi 0, %s137
      %s154 = sphi 0, %s138
    $region4: #{tpu_custom_call.1} parent=1 // loop_header_branch
      %17 = sbr.rel (%p15) target = $region8
    $region5: #{tpu_custom_call.1} parent=1 // loop_body
      %s19 = ssub.s32 %s14, 1
      %s20 = ssub.s32 %s14, 2
      %s21 = sadd.s32 %s14, 1
      %s22 = ssub.s32 %s14, %s21
      %p23 = scmp.eq.s32.totalorder %s22, 0
      %s25 = sadd.s32 %s24, 1
      %s26 = scalar_select %p23, %s24, %s25
      %p29 = pneg %p23
      %p30 = scmp.eq.s32.totalorder %s14, 1
      %p31 = por %p29, %p30
      %p32 = scmp.ne.s32.totalorder %s24, %s27
      %p33 = scmp.eq.s32.totalorder %s14, 0
      %p34 = por %p32, %p33
      %p35 = scmp.ne.s32.totalorder %s24, %s27
      %p36 = scmp.eq.s32.totalorder %s19, 1
      %p37 = por %p35, %p36
      %p38 = scmp.ne.s32.totalorder %s27, %s28
      %p39 = scmp.eq.s32.totalorder %s19, 0
      %p40 = por %p38, %p39
      %p41 = scmp.ne.s32.totalorder %s27, %s28
      %p42 = scmp.eq.s32.totalorder %s20, 1
      %p43 = por %p41, %p42
      %p45 = scmp.ne.s32.totalorder %s28, %s44
      %p46 = scmp.eq.s32.totalorder %s20, 0
      %p47 = por %p45, %p46
      %s49 = sadd.s32 %s48, 1
      %p52 = scmp.eq.s32.totalorder %s14, 1
      %p53 = scmp.ne.s32.totalorder %s48, %s50
      %p54 = scmp.eq.s32.totalorder %s14, 0
      %p55 = por %p53, %p54
      %p56 = scmp.ne.s32.totalorder %s48, %s50
      %p57 = scmp.eq.s32.totalorder %s19, 1
      %p58 = por %p56, %p57
      %p59 = scmp.ne.s32.totalorder %s50, %s51
      %p60 = scmp.eq.s32.totalorder %s19, 0
      %p61 = por %p59, %p60
      %p62 = scmp.ne.s32.totalorder %s50, %s51
      %p63 = scmp.eq.s32.totalorder %s20, 1
      %p64 = por %p62, %p63
      %p66 = scmp.ne.s32.totalorder %s51, %s65
      %p67 = scmp.eq.s32.totalorder %s20, 0
      %p68 = por %p66, %p67
      %s70 = sadd.s32 %s69, 1
      %p73 = scmp.eq.s32.totalorder %s14, 1
      %p74 = scmp.ne.s32.totalorder %s69, %s71
      %p75 = scmp.eq.s32.totalorder %s14, 0
      %p76 = por %p74, %p75
      %p77 = scmp.ne.s32.totalorder %s69, %s71
      %p78 = scmp.eq.s32.totalorder %s19, 1
      %p79 = por %p77, %p78
      %p80 = scmp.ne.s32.totalorder %s71, %s72
      %p81 = scmp.eq.s32.totalorder %s19, 0
      %p82 = por %p80, %p81
      %p83 = scmp.ne.s32.totalorder %s71, %s72
      %p84 = scmp.eq.s32.totalorder %s20, 1
      %p85 = por %p83, %p84
      %p87 = scmp.ne.s32.totalorder %s72, %s86
      %p88 = scmp.eq.s32.totalorder %s20, 0
      %p89 = por %p87, %p88
      %s91 = sadd.s32 %s90, 1
      %p94 = scmp.eq.s32.totalorder %s14, 1
      %p95 = scmp.ne.s32.totalorder %s90, %s92
      %p96 = scmp.eq.s32.totalorder %s14, 0
      %p97 = por %p95, %p96
      %p98 = scmp.ne.s32.totalorder %s90, %s92
      %p99 = scmp.eq.s32.totalorder %s19, 1
      %p100 = por %p98, %p99
      %p101 = scmp.ne.s32.totalorder %s92, %s93
      %p102 = scmp.eq.s32.totalorder %s19, 0
      %p103 = por %p101, %p102
      %p104 = scmp.ne.s32.totalorder %s92, %s93
      %p105 = scmp.eq.s32.totalorder %s20, 1
      %p106 = por %p104, %p105
      %p108 = scmp.ne.s32.totalorder %s93, %s107
      %p109 = scmp.eq.s32.totalorder %s20, 0
      %p110 = por %p108, %p109
      %s112 = sadd.s32 %s111, 1
      %p115 = scmp.eq.s32.totalorder %s14, 1
      %p116 = scmp.ne.s32.totalorder %s111, %s113
      %p117 = scmp.eq.s32.totalorder %s14, 0
      %p118 = por %p116, %p117
      %p119 = scmp.ne.s32.totalorder %s111, %s113
      %p120 = scmp.eq.s32.totalorder %s19, 1
      %p121 = por %p119, %p120
      %p122 = scmp.ne.s32.totalorder %s113, %s114
      %p123 = scmp.eq.s32.totalorder %s19, 0
      %p124 = por %p122, %p123
      %p125 = scmp.ne.s32.totalorder %s113, %s114
      %p126 = scmp.eq.s32.totalorder %s20, 1
      %p127 = por %p125, %p126
      %p129 = scmp.ne.s32.totalorder %s114, %s128
      %p130 = scmp.eq.s32.totalorder %s20, 0
      %p131 = por %p129, %p130
      %s132 = ssub.s32 %s14, %s21
      %p133 = scmp.eq.s32.totalorder %s132, 0
      %s135 = sadd.s32 %s134, 1
      %s136 = scalar_select %p133, %s134, %s135
      %p139 = pneg %p133
      %p140 = scmp.eq.s32.totalorder %s14, 1
      %p141 = por %p139, %p140
      %p142 = scmp.ne.s32.totalorder %s134, %s137
      %p143 = scmp.eq.s32.totalorder %s14, 0
      %p144 = por %p142, %p143
      %p145 = scmp.ne.s32.totalorder %s134, %s137
      %p146 = scmp.eq.s32.totalorder %s19, 1
      %p147 = por %p145, %p146
      %p148 = scmp.ne.s32.totalorder %s137, %s138
      %p149 = scmp.eq.s32.totalorder %s19, 0
      %p150 = por %p148, %p149
      %p151 = scmp.ne.s32.totalorder %s137, %s138
      %p152 = scmp.eq.s32.totalorder %s20, 1
      %p153 = por %p151, %p152
      %p155 = scmp.ne.s32.totalorder %s138, %s154
      %p156 = scmp.eq.s32.totalorder %s20, 0
      %p157 = por %p155, %p156
      %p158 = scmp.le.s32.totalorder 1, %s14
      %p159 = scmp.lt.s32.totalorder %s14, 3
      %p160 = pnand %p158, %p159
      %p161 = pneg %p160
      // Predicated region
      $region9: #{tpu_custom_call.1} parent=5 // pred_check
        _
      $region10: #{tpu_custom_call.1} parent=5 // pred_check_branch
        %163 = sbr.rel (%p160) target = $region12
      $region11: #{tpu_custom_call.1} parent=5 // pred_region
        %s164 = ssub.s32 %s14, 1
        // Predicated region
        $region13: #{tpu_custom_call.1} parent=11 // pred_check
          %p165 = pneg %p61
        $region14: #{tpu_custom_call.1} parent=11 // pred_check_branch
          %167 = sbr.rel (%p165) target = $region16
        $region15: #{tpu_custom_call.1} parent=11 // pred_region
          _
        $region16: #{tpu_custom_call.1} parent=11 // pred_fallthru
          _
        // Predicated region
        $region17: #{tpu_custom_call.1} parent=11 // pred_check
          %p168 = pneg %p82
        $region18: #{tpu_custom_call.1} parent=11 // pred_check_branch
          %170 = sbr.rel (%p168) target = $region20
        $region19: #{tpu_custom_call.1} parent=11 // pred_region
          _
        $region20: #{tpu_custom_call.1} parent=11 // pred_fallthru
          _
        // Predicated region
        $region21: #{tpu_custom_call.1} parent=11 // pred_check
          %p171 = pneg %p103
        $region22: #{tpu_custom_call.1} parent=11 // pred_check_branch
          %173 = sbr.rel (%p171) target = $region24
        $region23: #{tpu_custom_call.1} parent=11 // pred_region
          _
        $region24: #{tpu_custom_call.1} parent=11 // pred_fallthru
          _
        // Predicated region
        $region25: #{tpu_custom_call.1} parent=11 // pred_check
          %p174 = pneg %p124
        $region26: #{tpu_custom_call.1} parent=11 // pred_check_branch
          %176 = sbr.rel (%p174) target = $region28
        $region27: #{tpu_custom_call.1} parent=11 // pred_region
          _
        $region28: #{tpu_custom_call.1} parent=11 // pred_fallthru
          _
      $region12: #{tpu_custom_call.1} parent=5 // pred_fallthru
        _
      %p177 = scmp.lt.s32.totalorder %s14, 2
      // Predicated region
      $region29: #{tpu_custom_call.1} parent=5 // pred_check
        %p178 = pneg %p177
      $region30: #{tpu_custom_call.1} parent=5 // pred_check_branch
        %180 = sbr.rel (%p178) target = $region32
      $region31: #{tpu_custom_call.1} parent=5 // pred_region
        // Predicated region
        $region33: #{tpu_custom_call.1} parent=31 // pred_check
          %p181 = pneg %p34
        $region34: #{tpu_custom_call.1} parent=31 // pred_check_branch
          %183 = sbr.rel (%p181) target = $region36
        $region35: #{tpu_custom_call.1} parent=31 // pred_region
          %p184 = scmp.lt.s32.totalorder %s14, 1
          %s185 = scalar_select %p184, %s14, 1
          %s186 = smul.addr %s185, 2
          %s187 = smul.addr %s186, 4
          %s188 = scalar_lea.vmem %s0, %s187
        $region36: #{tpu_custom_call.1} parent=31 // pred_fallthru
          _
      $region32: #{tpu_custom_call.1} parent=5 // pred_fallthru
        _
      %p189 = scmp.le.s32.totalorder 1, %s14
      %p190 = scmp.lt.s32.totalorder %s14, 3
      %p191 = pnand %p189, %p190
      %p192 = pneg %p191
      // Predicated region
      $region37: #{tpu_custom_call.1} parent=5 // pred_check
        _
      $region38: #{tpu_custom_call.1} parent=5 // pred_check_branch
        %194 = sbr.rel (%p191) target = $region40
      $region39: #{tpu_custom_call.1} parent=5 // pred_region
        %s195 = ssub.s32 %s14, 1
        %p196 = scmp.lt.s32.totalorder %s19, 1
        %s197 = scalar_select %p196, %s19, 1
        %s198 = smul.addr %s197, 2
        %s199 = smul.addr %s198, 4
        %s200 = scalar_lea.vmem %s0, %s199
        %p201 = pneg %p40
        %p202 = pneg %p37
        %p203 = pneg %p61
        %p204 = pneg %p58
        %p205 = pneg %p82
        %p206 = pneg %p79
        %p207 = pneg %p103
        %p208 = pneg %p100
        %p209 = pneg %p124
        %p210 = pneg %p121
        %p211 = pneg %p150
        %p212 = pneg %p147
        %s213 = sand.u32 %s137, 1
        %s214 = scalar_lea.sflag [#allocation3], %s213
        %s215 = sand.u32 %s137, 1
        %s216 = smul.addr %s215, 16
        %s217 = scalar_lea.vmem [#allocation2], %s216
        %p218 = scmp.lt.s32.totalorder %s19, 1
        %s219 = scalar_select %p218, %s19, 1
        %s220 = smul.addr %s219, 2
        %s221 = smul.addr %s220, 4
        %s222 = scalar_lea.vmem %s0, %s221
        %v223 = vlaneseq
        %v224 = vand.u32 %v223, 127
        %v225 = vadd.s32 %v224, 128
        %vm226 = vcmp.lt.s32.totalorder %v224, 0
        %v227 = vsub.s32 0, %v224
        %v228 = vsel %vm226, %v227, %v224
        %v229 = vshrl.u32 %v228, 4
        %v230 = vand.u32 %v228, 15
        %v231 = vsub.s32 0, %v230
        %v232 = vsel %vm226, %v231, %v230
        %vm233 = vcmp.lt.s32.totalorder %v225, 0
        %v234 = vsub.s32 0, %v225
        %v235 = vsel %vm233, %v234, %v225
        %v236 = vshrl.u32 %v235, 4
        %v237 = vand.u32 %v235, 15
        %v238 = vsub.s32 0, %v237
        %v239 = vsel %vm233, %v238, %v237
        %vm240 = vcmp.ne.s32.totalorder %v232, 0
        %vm241 = vcmp.ne.s32.totalorder %v239, 0
        %vm242 = vcmp.lt.s32.totalorder %v232, 0
        %vm243 = vcmp.lt.s32.totalorder %v239, 0
        %vm244 = vmand %vm242, %vm240
        %vm245 = vmand %vm243, %vm241
        %v246 = vadd.s32 %v232, 16
        %v247 = vadd.s32 %v239, 16
        %v248 = vsel %vm244, %v246, %v232
        %v249 = vsel %vm245, %v247, %v239
        %vm250 = vcmp.ge.s32.totalorder %v224, 16
        %vm251 = vcmp.ge.s32.totalorder %v225, 16
        %vm252 = vcmp.lt.s32.totalorder %v224, 240
        %vm253 = vcmp.lt.s32.totalorder %v225, 240
        %vm254 = vcmp.ge.s32.totalorder %v248, 1
        %vm255 = vcmp.ge.s32.totalorder %v249, 1
        %vm256 = vcmp.le.s32.totalorder %v248, 14
        %vm257 = vcmp.le.s32.totalorder %v249, 14
        %vm258 = vmand %vm250, %vm254
        %vm259 = vmand %vm251, %vm255
        %vm260 = vmand %vm250, %vm256
        %vm261 = vmand %vm251, %vm257
        %vm262 = vmand %vm252, %vm254
        %vm263 = vmand %vm253, %vm255
        %vm264 = vmand %vm252, %vm256
        %vm265 = vmand %vm253, %vm257
        %v266 = vld [vmem:[%s1] sm:$0xf]
        %v267 = vld [vmem:[%s2] sm:$0xf]
        %v268 = vld [vmem:[%s3] sm:$0xff]
        %v269 = vld [vmem:[%s4] sm:$0xff]
        %v270 = vld [vmem:[%s222] sm:$0xff]
        %272 = vset.pattern.permute.xlu0 4
        %273 = vperm.xlu0 %272, %v266
        %v274 = vpop.permute.xlu0 %273
        %v276 = vunpack.c.l.s4 839922192
        %v277 = vunpack.c.0.s8 %v276
        %v278 = vlaneseq
        %v279 = vshrl.u32 %v278, 7
        %v280 = vsub.s32 %v277, %v279
        %v281 = vrot.slane %v274, %v280
        %v283 = vmul.f32 %v270, %v281
        %v285 = vcombine.high %v270, %v270
        %287 = vrot.lane.b32.xlu0 %v270, 17
        %v288 = vpop.permute.xlu0 %287
        %289 = vrot.lane.b32.xlu0 %v285, 17
        %v290 = vpop.permute.xlu0 %289
        %vm291 = vcmp.lt.s32.totalorder %v224, 17
        %v292 = vsel %vm291, %v288, %v290
        %v293 = vsel %vm291, %v290, %v288
        %v294 = vsel %vm258, 1, 0
        %v295 = vsel %vm259, 1, 0
        %vm296 = vcmp.eq.s32.totalorder %v294, 1
        %vm297 = vcmp.eq.s32.totalorder %v295, 1
        %v298 = vsel %vm296, %v293, 0.0
        %v299 = vsel %vm297, %v292, 0.0
        %300 = vset.pattern.permute.xlu0 0
        %301 = vperm.xlu0 %300, %v266
        %v302 = vpop.permute.xlu0 %301
        %v304 = vmul.f32 %v298, %v302
        %v305 = vmul.f32 %v299, %v302
        %v308 = vcombine.low %v304, %v305
        %v310 = vadd.f32 %v283, %v308
        %311 = vrot.lane.b32.xlu0 %v270, 16
        %v312 = vpop.permute.xlu0 %311
        %313 = vrot.lane.b32.xlu0 %v285, 16
        %v314 = vpop.permute.xlu0 %313
        %vm315 = vcmp.lt.s32.totalorder %v224, 16
        %v316 = vsel %vm315, %v312, %v314
        %v317 = vsel %vm315, %v314, %v312
        %v318 = vsel %vm250, 1, 0
        %v319 = vsel %vm251, 1, 0
        %vm320 = vcmp.eq.s32.totalorder %v318, 1
        %vm321 = vcmp.eq.s32.totalorder %v319, 1
        %v322 = vsel %vm320, %v317, 0.0
        %v323 = vsel %vm321, %v316, 0.0
        %324 = vset.pattern.permute.xlu0 1
        %325 = vperm.xlu0 %324, %v266
        %v326 = vpop.permute.xlu0 %325
        %v328 = vmul.f32 %v322, %v326
        %v329 = vmul.f32 %v323, %v326
        %v332 = vcombine.low %v328, %v329
        %v334 = vadd.f32 %v310, %v332
        %335 = vrot.lane.b32.xlu0 %v270, 15
        %v336 = vpop.permute.xlu0 %335
        %337 = vrot.lane.b32.xlu0 %v285, 15
        %v338 = vpop.permute.xlu0 %337
        %vm339 = vcmp.lt.s32.totalorder %v224, 15
        %v340 = vsel %vm339, %v336, %v338
        %v341 = vsel %vm339, %v338, %v336
        %v342 = vsel %vm260, 1, 0
        %v343 = vsel %vm261, 1, 0
        %vm344 = vcmp.eq.s32.totalorder %v342, 1
        %vm345 = vcmp.eq.s32.totalorder %v343, 1
        %v346 = vsel %vm344, %v341, 0.0
        %v347 = vsel %vm345, %v340, 0.0
        %348 = vset.pattern.permute.xlu0 2
        %349 = vperm.xlu0 %348, %v266
        %v350 = vpop.permute.xlu0 %349
        %v352 = vmul.f32 %v346, %v350
        %v353 = vmul.f32 %v347, %v350
        %v356 = vcombine.low %v352, %v353
        %v358 = vadd.f32 %v334, %v356
        %359 = vrot.lane.b32.xlu0 %v270, 1
        %v360 = vpop.permute.xlu0 %359
        %361 = vrot.lane.b32.xlu0 %v285, 1
        %v362 = vpop.permute.xlu0 %361
        %vm363 = vcmp.lt.s32.totalorder %v224, 1
        %v364 = vsel %vm363, %v360, %v362
        %v365 = vsel %vm363, %v362, %v360
        %v366 = vsel %vm254, 1, 0
        %v367 = vsel %vm255, 1, 0
        %vm368 = vcmp.eq.s32.totalorder %v366, 1
        %vm369 = vcmp.eq.s32.totalorder %v367, 1
        %v370 = vsel %vm368, %v365, 0.0
        %v371 = vsel %vm369, %v364, 0.0
        %372 = vset.pattern.permute.xlu0 3
        %373 = vperm.xlu0 %372, %v266
        %v374 = vpop.permute.xlu0 %373
        %v376 = vmul.f32 %v370, %v374
        %v377 = vmul.f32 %v371, %v374
        %v380 = vcombine.low %v376, %v377
        %v382 = vadd.f32 %v358, %v380
        %383 = vrot.lane.b32.xlu0 %v270, 127
        %v384 = vpop.permute.xlu0 %383
        %385 = vrot.lane.b32.xlu0 %v285, 127
        %v386 = vpop.permute.xlu0 %385
        %vm387 = vcmp.lt.s32.totalorder %v224, 127
        %v388 = vsel %vm387, %v384, %v386
        %v389 = vsel %vm387, %v386, %v384
        %v390 = vsel %vm256, 1, 0
        %v391 = vsel %vm257, 1, 0
        %vm392 = vcmp.eq.s32.totalorder %v390, 1
        %vm393 = vcmp.eq.s32.totalorder %v391, 1
        %v394 = vsel %vm392, %v388, 0.0
        %v395 = vsel %vm393, %v389, 0.0
        %396 = vset.pattern.permute.xlu0 5
        %397 = vperm.xlu0 %396, %v266
        %v398 = vpop.permute.xlu0 %397
        %v400 = vmul.f32 %v394, %v398
        %v401 = vmul.f32 %v395, %v398
        %v404 = vcombine.low %v400, %v401
        %v406 = vadd.f32 %v382, %v404
        %407 = vrot.lane.b32.xlu0 %v270, 113
        %v408 = vpop.permute.xlu0 %407
        %409 = vrot.lane.b32.xlu0 %v285, 113
        %v410 = vpop.permute.xlu0 %409
        %vm411 = vcmp.lt.s32.totalorder %v224, 113
        %v412 = vsel %vm411, %v408, %v410
        %v413 = vsel %vm411, %v410, %v408
        %v414 = vsel %vm262, 1, 0
        %v415 = vsel %vm263, 1, 0
        %vm416 = vcmp.eq.s32.totalorder %v414, 1
        %vm417 = vcmp.eq.s32.totalorder %v415, 1
        %v418 = vsel %vm416, %v412, 0.0
        %v419 = vsel %vm417, %v413, 0.0
        %420 = vset.pattern.permute.xlu0 6
        %421 = vperm.xlu0 %420, %v266
        %v422 = vpop.permute.xlu0 %421
        %v424 = vmul.f32 %v418, %v422
        %v425 = vmul.f32 %v419, %v422
        %v428 = vcombine.low %v424, %v425
        %v430 = vadd.f32 %v406, %v428
        %431 = vrot.lane.b32.xlu0 %v270, 112
        %v432 = vpop.permute.xlu0 %431
        %433 = vrot.lane.b32.xlu0 %v285, 112
        %v434 = vpop.permute.xlu0 %433
        %vm435 = vcmp.lt.s32.totalorder %v224, 112
        %v436 = vsel %vm435, %v432, %v434
        %v437 = vsel %vm435, %v434, %v432
        %v438 = vsel %vm252, 1, 0
        %v439 = vsel %vm253, 1, 0
        %vm440 = vcmp.eq.s32.totalorder %v438, 1
        %vm441 = vcmp.eq.s32.totalorder %v439, 1
        %v442 = vsel %vm440, %v436, 0.0
        %v443 = vsel %vm441, %v437, 0.0
        %444 = vset.pattern.permute.xlu0 7
        %445 = vperm.xlu0 %444, %v266
        %v446 = vpop.permute.xlu0 %445
        %v448 = vmul.f32 %v442, %v446
        %v449 = vmul.f32 %v443, %v446
        %v452 = vcombine.low %v448, %v449
        %v454 = vadd.f32 %v430, %v452
        %455 = vrot.lane.b32.xlu0 %v270, 111
        %v456 = vpop.permute.xlu0 %455
        %457 = vrot.lane.b32.xlu0 %v285, 111
        %v458 = vpop.permute.xlu0 %457
        %vm459 = vcmp.lt.s32.totalorder %v224, 111
        %v460 = vsel %vm459, %v456, %v458
        %v461 = vsel %vm459, %v458, %v456
        %v462 = vsel %vm264, 1, 0
        %v463 = vsel %vm265, 1, 0
        %vm464 = vcmp.eq.s32.totalorder %v462, 1
        %vm465 = vcmp.eq.s32.totalorder %v463, 1
        %v466 = vsel %vm464, %v460, 0.0
        %v467 = vsel %vm465, %v461, 0.0
        %468 = vset.pattern.permute.xlu0 8
        %469 = vperm.xlu0 %468, %v266
        %v470 = vpop.permute.xlu0 %469
        %v472 = vmul.f32 %v466, %v470
        %v473 = vmul.f32 %v467, %v470
        %v476 = vcombine.low %v472, %v473
        %v478 = vadd.f32 %v454, %v476
        %480 = vset.pattern.permute.xlu0 0
        %481 = vperm.xlu0 %480, %v267
        %v482 = vpop.permute.xlu0 %481
        %v484 = vunpack.c.l.s4 839922192
        %v485 = vunpack.c.0.s8 %v484
        %v486 = vlaneseq
        %v487 = vshrl.u32 %v486, 7
        %v488 = vsub.s32 %v485, %v487
        %v489 = vrot.slane %v482, %v488
        %v491 = vadd.f32 %v478, %v489
        %v492 = vmax.f32 %v491, 0.0
        %494 = vset.pattern.permute.xlu0 0
        %495 = vperm.xlu0 %494, %v269
        %v496 = vpop.permute.xlu0 %495
        %v499 = vcombine.high %v492, %v492
        %vm500 = vcmask 31744
        %v502 = vsel %vm500, %v268, 0
        %vm504 = vcmask 1043456
        %v505 = vsel %vm504, %v492, 0
        %v507 = vsel %vm504, %v499, 0
        %v509 = vand.u32 %v507, 4294901760
        %510 = vmatprep.subr.mxu0 %v509
        %v511 = vand.u32 %v505, 4294901760
        %512 = vmatpush1.msra.mxu0 %v511
        %513 = vmatprep.subr.mxu0 0.0
        %514 = vmatpush1.msra.mxu0 0.0
        %515 = vmatprep.subr.mxu0 0.0
        %516 = vmatpush1.msra.mxu0 0.0
        %517 = vmatprep.subr.mxu0 0.0
        %518 = vmatpush1.msra.mxu0 0.0
        %519 = vmatprep.subr.mxu0 0.0
        %520 = vmatpush1.msra.mxu0 0.0
        %521 = vmatprep.subr.mxu0 0.0
        %522 = vmatpush1.msra.mxu0 0.0
        %523 = vmatprep.subr.mxu0 0.0
        %524 = vmatpush1.msra.mxu0 0.0
        %525 = vmatprep.subr.mxu0 0.0
        %526 = vmatpush1.msra.mxu0 0.0
        %527 = vmatprep.subr.mxu0 0.0
        %528 = vmatpush1.msra.mxu0 0.0
        %529 = vmatprep.subr.mxu0 0.0
        %530 = vmatpush1.msra.mxu0 0.0
        %531 = vmatprep.subr.mxu0 0.0
        %532 = vmatpush1.msra.mxu0 0.0
        %533 = vmatprep.subr.mxu0 0.0
        %534 = vmatpush1.msra.mxu0 0.0
        %535 = vmatprep.subr.mxu0 0.0
        %536 = vmatpush1.msra.mxu0 0.0
        %537 = vmatprep.subr.mxu0 0.0
        %538 = vmatpush1.msra.mxu0 0.0
        %539 = vmatprep.subr.mxu0 0.0
        %540 = vmatpush1.msra.mxu0 0.0
        %541 = vmatprep.subr.mxu0 0.0
        %542 = vmatpush1.msra.mxu0 0.0
        %543 = vmatprep.subr.mxu0 0.0
        %544 = vmatpush1.msra.mxu0 0.0
        %545 = vmatprep.subr.mxu0 0.0
        %546 = vmatpush1.msra.mxu0 0.0
        %547 = vmatprep.subr.mxu0 0.0
        %548 = vmatpush1.msra.mxu0 0.0
        %549 = vmatprep.subr.mxu0 0.0
        %550 = vmatpush1.msra.mxu0 0.0
        %551 = vmatprep.subr.mxu0 0.0
        %552 = vmatpush1.msra.mxu0 0.0
        %553 = vmatprep.subr.mxu0 0.0
        %554 = vmatpush1.msra.mxu0 0.0
        %555 = vmatprep.subr.mxu0 0.0
        %556 = vmatpush1.msra.mxu0 0.0
        %557 = vmatprep.subr.mxu0 0.0
        %558 = vmatpush1.msra.mxu0 0.0
        %559 = vmatprep.subr.mxu0 0.0
        %560 = vmatpush1.msra.mxu0 0.0
        %561 = vmatprep.subr.mxu0 0.0
        %562 = vmatpush1.msra.mxu0 0.0
        %563 = vmatprep.subr.mxu0 0.0
        %564 = vmatpush1.msra.mxu0 0.0
        %565 = vmatprep.subr.mxu0 0.0
        %566 = vmatpush1.msra.mxu0 0.0
        %567 = vmatprep.subr.mxu0 0.0
        %568 = vmatpush1.msra.mxu0 0.0
        %569 = vmatprep.subr.mxu0 0.0
        %570 = vmatpush1.msra.mxu0 0.0
        %571 = vmatprep.subr.mxu0 0.0
        %572 = vmatpush1.msra.mxu0 0.0
        %573 = vmatprep.subr.mxu0 0.0
        %574 = vmatpush1.msra.mxu0 0.0
        %575 = vmatprep.mubr.f32.mxu0 0.0
        %v576 = vand.u32 %v502, 4294901760
        %v577 = vsub.f32 %v502, %v576
        %v578 = vand.u32 %v577, 4294901760
        %v579 = vsub.f32 %v577, %v578
        %v580 = vand.u32 %v579, 4294901760
        %581 = vmatmul.mubr.f32.gmra.mrb[0].mxu0 %v580
        %v582 = vpop.f32.mrb[0].mxu0
        %v583 = vadd.f32 %v496, %v582
        %v584 = vpop.f32.mrb[0].mxu0
        %v585 = vadd.f32 %v496, %v584
        %586 = vdwg.mxu0
        %v587 = vand.u32 %v507, 4294901760
        %v588 = vsub.f32 %v507, %v587
        %v589 = vand.u32 %v588, 4294901760
        %v590 = vsub.f32 %v588, %v589
        %v591 = vand.u32 %v590, 4294901760
        %592 = vmatprep.subr.mxu0 %v591
        %v593 = vand.u32 %v505, 4294901760
        %v594 = vsub.f32 %v505, %v593
        %v595 = vand.u32 %v594, 4294901760
        %v596 = vsub.f32 %v594, %v595
        %v597 = vand.u32 %v596, 4294901760
        %598 = vmatpush1.msra.mxu0 %v597
        %599 = vmatprep.subr.mxu0 0.0
        %600 = vmatpush1.msra.mxu0 0.0
        %601 = vmatprep.subr.mxu0 0.0
        %602 = vmatpush1.msra.mxu0 0.0
        %603 = vmatprep.subr.mxu0 0.0
        %604 = vmatpush1.msra.mxu0 0.0
        %605 = vmatprep.subr.mxu0 0.0
        %606 = vmatpush1.msra.mxu0 0.0
        %607 = vmatprep.subr.mxu0 0.0
        %608 = vmatpush1.msra.mxu0 0.0
        %609 = vmatprep.subr.mxu0 0.0
        %610 = vmatpush1.msra.mxu0 0.0
        %611 = vmatprep.subr.mxu0 0.0
        %612 = vmatpush1.msra.mxu0 0.0
        %613 = vmatprep.subr.mxu0 0.0
        %614 = vmatpush1.msra.mxu0 0.0
        %615 = vmatprep.subr.mxu0 0.0
        %616 = vmatpush1.msra.mxu0 0.0
        %617 = vmatprep.subr.mxu0 0.0
        %618 = vmatpush1.msra.mxu0 0.0
        %619 = vmatprep.subr.mxu0 0.0
        %620 = vmatpush1.msra.mxu0 0.0
        %621 = vmatprep.subr.mxu0 0.0
        %622 = vmatpush1.msra.mxu0 0.0
        %623 = vmatprep.subr.mxu0 0.0
        %624 = vmatpush1.msra.mxu0 0.0
        %625 = vmatprep.subr.mxu0 0.0
        %626 = vmatpush1.msra.mxu0 0.0
        %627 = vmatprep.subr.mxu0 0.0
        %628 = vmatpush1.msra.mxu0 0.0
        %629 = vmatprep.subr.mxu0 0.0
        %630 = vmatpush1.msra.mxu0 0.0
        %631 = vmatprep.subr.mxu0 0.0
        %632 = vmatpush1.msra.mxu0 0.0
        %633 = vmatprep.subr.mxu0 0.0
        %634 = vmatpush1.msra.mxu0 0.0
        %635 = vmatprep.subr.mxu0 0.0
        %636 = vmatpush1.msra.mxu0 0.0
        %637 = vmatprep.subr.mxu0 0.0
        %638 = vmatpush1.msra.mxu0 0.0
        %639 = vmatprep.subr.mxu0 0.0
        %640 = vmatpush1.msra.mxu0 0.0
        %641 = vmatprep.subr.mxu0 0.0
        %642 = vmatpush1.msra.mxu0 0.0
        %643 = vmatprep.subr.mxu0 0.0
        %644 = vmatpush1.msra.mxu0 0.0
        %645 = vmatprep.subr.mxu0 0.0
        %646 = vmatpush1.msra.mxu0 0.0
        %647 = vmatprep.subr.mxu0 0.0
        %648 = vmatpush1.msra.mxu0 0.0
        %649 = vmatprep.subr.mxu0 0.0
        %650 = vmatpush1.msra.mxu0 0.0
        %651 = vmatprep.subr.mxu0 0.0
        %652 = vmatpush1.msra.mxu0 0.0
        %653 = vmatprep.subr.mxu0 0.0
        %654 = vmatpush1.msra.mxu0 0.0
        %655 = vmatprep.subr.mxu0 0.0
        %656 = vmatpush1.msra.mxu0 0.0
        %657 = vmatprep.subr.mxu0 0.0
        %658 = vmatpush1.msra.mxu0 0.0
        %659 = vmatprep.subr.mxu0 0.0
        %660 = vmatpush1.msra.mxu0 0.0
        %661 = vmatprep.mubr.f32.mxu0 0.0
        %v662 = vand.u32 %v502, 4294901760
        %663 = vmatmul.mubr.f32.gmra.mrb[0].mxu0 %v662
        %v664 = vpop.f32.mrb[0].mxu0
        %v665 = vadd.f32 %v583, %v664
        %v666 = vpop.f32.mrb[0].mxu0
        %v667 = vadd.f32 %v585, %v666
        %668 = vdwg.mxu0
        %v669 = vand.u32 %v507, 4294901760
        %v670 = vsub.f32 %v507, %v669
        %671 = vmatprep.subr.mxu0 %v670
        %v672 = vand.u32 %v505, 4294901760
        %v673 = vsub.f32 %v505, %v672
        %674 = vmatpush1.msra.mxu0 %v673
        %675 = vmatprep.subr.mxu0 0.0
        %676 = vmatpush1.msra.mxu0 0.0
        %677 = vmatprep.subr.mxu0 0.0
        %678 = vmatpush1.msra.mxu0 0.0
        %679 = vmatprep.subr.mxu0 0.0
        %680 = vmatpush1.msra.mxu0 0.0
        %681 = vmatprep.subr.mxu0 0.0
        %682 = vmatpush1.msra.mxu0 0.0
        %683 = vmatprep.subr.mxu0 0.0
        %684 = vmatpush1.msra.mxu0 0.0
        %685 = vmatprep.subr.mxu0 0.0
        %686 = vmatpush1.msra.mxu0 0.0
        %687 = vmatprep.subr.mxu0 0.0
        %688 = vmatpush1.msra.mxu0 0.0
        %689 = vmatprep.subr.mxu0 0.0
        %690 = vmatpush1.msra.mxu0 0.0
        %691 = vmatprep.subr.mxu0 0.0
        %692 = vmatpush1.msra.mxu0 0.0
        %693 = vmatprep.subr.mxu0 0.0
        %694 = vmatpush1.msra.mxu0 0.0
        %695 = vmatprep.subr.mxu0 0.0
        %696 = vmatpush1.msra.mxu0 0.0
        %697 = vmatprep.subr.mxu0 0.0
        %698 = vmatpush1.msra.mxu0 0.0
        %699 = vmatprep.subr.mxu0 0.0
        %700 = vmatpush1.msra.mxu0 0.0
        %701 = vmatprep.subr.mxu0 0.0
        %702 = vmatpush1.msra.mxu0 0.0
        %703 = vmatprep.subr.mxu0 0.0
        %704 = vmatpush1.msra.mxu0 0.0
        %705 = vmatprep.subr.mxu0 0.0
        %706 = vmatpush1.msra.mxu0 0.0
        %707 = vmatprep.subr.mxu0 0.0
        %708 = vmatpush1.msra.mxu0 0.0
        %709 = vmatprep.subr.mxu0 0.0
        %710 = vmatpush1.msra.mxu0 0.0
        %711 = vmatprep.subr.mxu0 0.0
        %712 = vmatpush1.msra.mxu0 0.0
        %713 = vmatprep.subr.mxu0 0.0
        %714 = vmatpush1.msra.mxu0 0.0
        %715 = vmatprep.subr.mxu0 0.0
        %716 = vmatpush1.msra.mxu0 0.0
        %717 = vmatprep.subr.mxu0 0.0
        %718 = vmatpush1.msra.mxu0 0.0
        %719 = vmatprep.subr.mxu0 0.0
        %720 = vmatpush1.msra.mxu0 0.0
        %721 = vmatprep.subr.mxu0 0.0
        %722 = vmatpush1.msra.mxu0 0.0
        %723 = vmatprep.subr.mxu0 0.0
        %724 = vmatpush1.msra.mxu0 0.0
        %725 = vmatprep.subr.mxu0 0.0
        %726 = vmatpush1.msra.mxu0 0.0
        %727 = vmatprep.subr.mxu0 0.0
        %728 = vmatpush1.msra.mxu0 0.0
        %729 = vmatprep.subr.mxu0 0.0
        %730 = vmatpush1.msra.mxu0 0.0
        %731 = vmatprep.subr.mxu0 0.0
        %732 = vmatpush1.msra.mxu0 0.0
        %733 = vmatprep.subr.mxu0 0.0
        %734 = vmatpush1.msra.mxu0 0.0
        %735 = vmatprep.subr.mxu0 0.0
        %736 = vmatpush1.msra.mxu0 0.0
        %737 = vmatprep.mubr.f32.mxu0 0.0
        %v738 = vand.u32 %v502, 4294901760
        %v739 = vsub.f32 %v502, %v738
        %740 = vmatmul.mubr.f32.gmra.mrb[0].mxu0 %v739
        %v741 = vpop.f32.mrb[0].mxu0
        %v742 = vadd.f32 %v665, %v741
        %v743 = vpop.f32.mrb[0].mxu0
        %v744 = vadd.f32 %v667, %v743
        %745 = vdwg.mxu0
        %v746 = vand.u32 %v507, 4294901760
        %747 = vmatprep.subr.mxu0 %v746
        %v748 = vand.u32 %v505, 4294901760
        %749 = vmatpush1.msra.mxu0 %v748
        %750 = vmatprep.subr.mxu0 0.0
        %751 = vmatpush1.msra.mxu0 0.0
        %752 = vmatprep.subr.mxu0 0.0
        %753 = vmatpush1.msra.mxu0 0.0
        %754 = vmatprep.subr.mxu0 0.0
        %755 = vmatpush1.msra.mxu0 0.0
        %756 = vmatprep.subr.mxu0 0.0
        %757 = vmatpush1.msra.mxu0 0.0
        %758 = vmatprep.subr.mxu0 0.0
        %759 = vmatpush1.msra.mxu0 0.0
        %760 = vmatprep.subr.mxu0 0.0
        %761 = vmatpush1.msra.mxu0 0.0
        %762 = vmatprep.subr.mxu0 0.0
        %763 = vmatpush1.msra.mxu0 0.0
        %764 = vmatprep.subr.mxu0 0.0
        %765 = vmatpush1.msra.mxu0 0.0
        %766 = vmatprep.subr.mxu0 0.0
        %767 = vmatpush1.msra.mxu0 0.0
        %768 = vmatprep.subr.mxu0 0.0
        %769 = vmatpush1.msra.mxu0 0.0
        %770 = vmatprep.subr.mxu0 0.0
        %771 = vmatpush1.msra.mxu0 0.0
        %772 = vmatprep.subr.mxu0 0.0
        %773 = vmatpush1.msra.mxu0 0.0
        %774 = vmatprep.subr.mxu0 0.0
        %775 = vmatpush1.msra.mxu0 0.0
        %776 = vmatprep.subr.mxu0 0.0
        %777 = vmatpush1.msra.mxu0 0.0
        %778 = vmatprep.subr.mxu0 0.0
        %779 = vmatpush1.msra.mxu0 0.0
        %780 = vmatprep.subr.mxu0 0.0
        %781 = vmatpush1.msra.mxu0 0.0
        %782 = vmatprep.subr.mxu0 0.0
        %783 = vmatpush1.msra.mxu0 0.0
        %784 = vmatprep.subr.mxu0 0.0
        %785 = vmatpush1.msra.mxu0 0.0
        %786 = vmatprep.subr.mxu0 0.0
        %787 = vmatpush1.msra.mxu0 0.0
        %788 = vmatprep.subr.mxu0 0.0
        %789 = vmatpush1.msra.mxu0 0.0
        %790 = vmatprep.subr.mxu0 0.0
        %791 = vmatpush1.msra.mxu0 0.0
        %792 = vmatprep.subr.mxu0 0.0
        %793 = vmatpush1.msra.mxu0 0.0
        %794 = vmatprep.subr.mxu0 0.0
        %795 = vmatpush1.msra.mxu0 0.0
        %796 = vmatprep.subr.mxu0 0.0
        %797 = vmatpush1.msra.mxu0 0.0
        %798 = vmatprep.subr.mxu0 0.0
        %799 = vmatpush1.msra.mxu0 0.0
        %800 = vmatprep.subr.mxu0 0.0
        %801 = vmatpush1.msra.mxu0 0.0
        %802 = vmatprep.subr.mxu0 0.0
        %803 = vmatpush1.msra.mxu0 0.0
        %804 = vmatprep.subr.mxu0 0.0
        %805 = vmatpush1.msra.mxu0 0.0
        %806 = vmatprep.subr.mxu0 0.0
        %807 = vmatpush1.msra.mxu0 0.0
        %808 = vmatprep.subr.mxu0 0.0
        %809 = vmatpush1.msra.mxu0 0.0
        %810 = vmatprep.subr.mxu0 0.0
        %811 = vmatpush1.msra.mxu0 0.0
        %812 = vmatprep.mubr.f32.mxu0 0.0
        %v813 = vand.u32 %v502, 4294901760
        %v814 = vsub.f32 %v502, %v813
        %v815 = vand.u32 %v814, 4294901760
        %816 = vmatmul.mubr.f32.gmra.mrb[0].mxu0 %v815
        %v817 = vpop.f32.mrb[0].mxu0
        %v818 = vadd.f32 %v742, %v817
        %v819 = vpop.f32.mrb[0].mxu0
        %v820 = vadd.f32 %v744, %v819
        %821 = vdwg.mxu0
        %v822 = vand.u32 %v507, 4294901760
        %v823 = vsub.f32 %v507, %v822
        %v824 = vand.u32 %v823, 4294901760
        %825 = vmatprep.subr.mxu0 %v824
        %v826 = vand.u32 %v505, 4294901760
        %v827 = vsub.f32 %v505, %v826
        %v828 = vand.u32 %v827, 4294901760
        %829 = vmatpush1.msra.mxu0 %v828
        %830 = vmatprep.subr.mxu0 0.0
        %831 = vmatpush1.msra.mxu0 0.0
        %832 = vmatprep.subr.mxu0 0.0
        %833 = vmatpush1.msra.mxu0 0.0
        %834 = vmatprep.subr.mxu0 0.0
        %835 = vmatpush1.msra.mxu0 0.0
        %836 = vmatprep.subr.mxu0 0.0
        %837 = vmatpush1.msra.mxu0 0.0
        %838 = vmatprep.subr.mxu0 0.0
        %839 = vmatpush1.msra.mxu0 0.0
        %840 = vmatprep.subr.mxu0 0.0
        %841 = vmatpush1.msra.mxu0 0.0
        %842 = vmatprep.subr.mxu0 0.0
        %843 = vmatpush1.msra.mxu0 0.0
        %844 = vmatprep.subr.mxu0 0.0
        %845 = vmatpush1.msra.mxu0 0.0
        %846 = vmatprep.subr.mxu0 0.0
        %847 = vmatpush1.msra.mxu0 0.0
        %848 = vmatprep.subr.mxu0 0.0
        %849 = vmatpush1.msra.mxu0 0.0
        %850 = vmatprep.subr.mxu0 0.0
        %851 = vmatpush1.msra.mxu0 0.0
        %852 = vmatprep.subr.mxu0 0.0
        %853 = vmatpush1.msra.mxu0 0.0
        %854 = vmatprep.subr.mxu0 0.0
        %855 = vmatpush1.msra.mxu0 0.0
        %856 = vmatprep.subr.mxu0 0.0
        %857 = vmatpush1.msra.mxu0 0.0
        %858 = vmatprep.subr.mxu0 0.0
        %859 = vmatpush1.msra.mxu0 0.0
        %860 = vmatprep.subr.mxu0 0.0
        %861 = vmatpush1.msra.mxu0 0.0
        %862 = vmatprep.subr.mxu0 0.0
        %863 = vmatpush1.msra.mxu0 0.0
        %864 = vmatprep.subr.mxu0 0.0
        %865 = vmatpush1.msra.mxu0 0.0
        %866 = vmatprep.subr.mxu0 0.0
        %867 = vmatpush1.msra.mxu0 0.0
        %868 = vmatprep.subr.mxu0 0.0
        %869 = vmatpush1.msra.mxu0 0.0
        %870 = vmatprep.subr.mxu0 0.0
        %871 = vmatpush1.msra.mxu0 0.0
        %872 = vmatprep.subr.mxu0 0.0
        %873 = vmatpush1.msra.mxu0 0.0
        %874 = vmatprep.subr.mxu0 0.0
        %875 = vmatpush1.msra.mxu0 0.0
        %876 = vmatprep.subr.mxu0 0.0
        %877 = vmatpush1.msra.mxu0 0.0
        %878 = vmatprep.subr.mxu0 0.0
        %879 = vmatpush1.msra.mxu0 0.0
        %880 = vmatprep.subr.mxu0 0.0
        %881 = vmatpush1.msra.mxu0 0.0
        %882 = vmatprep.subr.mxu0 0.0
        %883 = vmatpush1.msra.mxu0 0.0
        %884 = vmatprep.subr.mxu0 0.0
        %885 = vmatpush1.msra.mxu0 0.0
        %886 = vmatprep.subr.mxu0 0.0
        %887 = vmatpush1.msra.mxu0 0.0
        %888 = vmatprep.subr.mxu0 0.0
        %889 = vmatpush1.msra.mxu0 0.0
        %890 = vmatprep.subr.mxu0 0.0
        %891 = vmatpush1.msra.mxu0 0.0
        %892 = vmatprep.mubr.f32.mxu0 0.0
        %v893 = vand.u32 %v502, 4294901760
        %894 = vmatmul.mubr.f32.gmra.mrb[0].mxu0 %v893
        %v895 = vpop.f32.mrb[0].mxu0
        %v896 = vadd.f32 %v818, %v895
        %v897 = vpop.f32.mrb[0].mxu0
        %v898 = vadd.f32 %v820, %v897
        %899 = vdwg.mxu0
        %v900 = vand.u32 %v507, 4294901760
        %901 = vmatprep.subr.mxu0 %v900
        %v902 = vand.u32 %v505, 4294901760
        %903 = vmatpush1.msra.mxu0 %v902
        %904 = vmatprep.subr.mxu0 0.0
        %905 = vmatpush1.msra.mxu0 0.0
        %906 = vmatprep.subr.mxu0 0.0
        %907 = vmatpush1.msra.mxu0 0.0
        %908 = vmatprep.subr.mxu0 0.0
        %909 = vmatpush1.msra.mxu0 0.0
        %910 = vmatprep.subr.mxu0 0.0
        %911 = vmatpush1.msra.mxu0 0.0
        %912 = vmatprep.subr.mxu0 0.0
        %913 = vmatpush1.msra.mxu0 0.0
        %914 = vmatprep.subr.mxu0 0.0
        %915 = vmatpush1.msra.mxu0 0.0
        %916 = vmatprep.subr.mxu0 0.0
        %917 = vmatpush1.msra.mxu0 0.0
        %918 = vmatprep.subr.mxu0 0.0
        %919 = vmatpush1.msra.mxu0 0.0
        %920 = vmatprep.subr.mxu0 0.0
        %921 = vmatpush1.msra.mxu0 0.0
        %922 = vmatprep.subr.mxu0 0.0
        %923 = vmatpush1.msra.mxu0 0.0
        %924 = vmatprep.subr.mxu0 0.0
        %925 = vmatpush1.msra.mxu0 0.0
        %926 = vmatprep.subr.mxu0 0.0
        %927 = vmatpush1.msra.mxu0 0.0
        %928 = vmatprep.subr.mxu0 0.0
        %929 = vmatpush1.msra.mxu0 0.0
        %930 = vmatprep.subr.mxu0 0.0
        %931 = vmatpush1.msra.mxu0 0.0
        %932 = vmatprep.subr.mxu0 0.0
        %933 = vmatpush1.msra.mxu0 0.0
        %934 = vmatprep.subr.mxu0 0.0
        %935 = vmatpush1.msra.mxu0 0.0
        %936 = vmatprep.subr.mxu0 0.0
        %937 = vmatpush1.msra.mxu0 0.0
        %938 = vmatprep.subr.mxu0 0.0
        %939 = vmatpush1.msra.mxu0 0.0
        %940 = vmatprep.subr.mxu0 0.0
        %941 = vmatpush1.msra.mxu0 0.0
        %942 = vmatprep.subr.mxu0 0.0
        %943 = vmatpush1.msra.mxu0 0.0
        %944 = vmatprep.subr.mxu0 0.0
        %945 = vmatpush1.msra.mxu0 0.0
        %946 = vmatprep.subr.mxu0 0.0
        %947 = vmatpush1.msra.mxu0 0.0
        %948 = vmatprep.subr.mxu0 0.0
        %949 = vmatpush1.msra.mxu0 0.0
        %950 = vmatprep.subr.mxu0 0.0
        %951 = vmatpush1.msra.mxu0 0.0
        %952 = vmatprep.subr.mxu0 0.0
        %953 = vmatpush1.msra.mxu0 0.0
        %954 = vmatprep.subr.mxu0 0.0
        %955 = vmatpush1.msra.mxu0 0.0
        %956 = vmatprep.subr.mxu0 0.0
        %957 = vmatpush1.msra.mxu0 0.0
        %958 = vmatprep.subr.mxu0 0.0
        %959 = vmatpush1.msra.mxu0 0.0
        %960 = vmatprep.subr.mxu0 0.0
        %961 = vmatpush1.msra.mxu0 0.0
        %962 = vmatprep.subr.mxu0 0.0
        %963 = vmatpush1.msra.mxu0 0.0
        %964 = vmatprep.subr.mxu0 0.0
        %965 = vmatpush1.msra.mxu0 0.0
        %966 = vmatprep.mubr.f32.mxu0 0.0
        %v967 = vand.u32 %v502, 4294901760
        %968 = vmatmul.mubr.f32.gmra.mrb[0].mxu0 %v967
        %v969 = vpop.f32.mrb[0].mxu0
        %v970 = vadd.f32 %v896, %v969
        %v971 = vpop.f32.mrb[0].mxu0
        %v972 = vadd.f32 %v898, %v971
        %973 = vdwg.mxu0
        %v974 = vmax.f32 %v970, 0.0
        %v975 = vmax.f32 %v972, 0.0
        %976 = vst [vmem:[%s217] sm:$0xff] %v974
        %977 = vst [vmem:[%s217 + $0x8] sm:$0xff] %v975
        %s978 = sand.u32 %s137, 1
        %s979 = scalar_lea.sflag [#allocation3], %s978
        %s980 = sand.u32 %s137, 1
        %s981 = smul.addr %s980, 16
        %s982 = scalar_lea.vmem [#allocation2], %s981
        // Predicated region
        $region41: #{tpu_custom_call.1} parent=39 // pred_check
          %p983 = pneg %p147
        $region42: #{tpu_custom_call.1} parent=39 // pred_check_branch
          %985 = sbr.rel (%p983) target = $region44
        $region43: #{tpu_custom_call.1} parent=39 // pred_region
          %s987 = ssub.s32 256, 256
          %988 = vsyncadd %s979, %s987
          %s989 = smul.addr %s19, 2
          %s990 = smul.addr %s989, 128
          %s991 = scalar_lea.hbm %s5, %s990
          %s993 = sshll.u32 %s982, 4
          %s994 = int_to_ptr.vmem [resolvable:$true] %s993
          %996 = dma.vmem_to_hbm [thread:$0]  %s994, 256, %s991, %s979
        $region44: #{tpu_custom_call.1} parent=39 // pred_fallthru
          _
      $region40: #{tpu_custom_call.1} parent=5 // pred_fallthru
        _
      %p997 = scmp.le.s32.totalorder 2, %s14
      // Predicated region
      $region45: #{tpu_custom_call.1} parent=5 // pred_check
        %p998 = pneg %p997
      $region46: #{tpu_custom_call.1} parent=5 // pred_check_branch
        %1000 = sbr.rel (%p998) target = $region48
      $region47: #{tpu_custom_call.1} parent=5 // pred_region
        %s1001 = ssub.s32 %s14, 2
        // Predicated region
        $region49: #{tpu_custom_call.1} parent=47 // pred_check
          %p1002 = pneg %p153
        $region50: #{tpu_custom_call.1} parent=47 // pred_check_branch
          %1004 = sbr.rel (%p1002) target = $region52
        $region51: #{tpu_custom_call.1} parent=47 // pred_region
          %s1005 = sand.u32 %s138, 1
          %s1006 = scalar_lea.sflag [#allocation3], %s1005
          %s1007 = sand.u32 %s138, 1
          %s1008 = smul.addr %s1007, 16
          %s1009 = scalar_lea.vmem [#allocation2], %s1008
          %1010 = dma.done %s1006, 256
        $region52: #{tpu_custom_call.1} parent=47 // pred_fallthru
          _
      $region48: #{tpu_custom_call.1} parent=5 // pred_fallthru
        _
    $region6: #{tpu_custom_call.1} parent=1 // loop_footer
      %s18 = sadd.s32 1, %s14
    $region7: #{tpu_custom_call.1} parent=1 // loop_footer_branch
      %13 = sbr.rel target = $region3
    $region8: #{tpu_custom_call.1} parent=1 // loop_exit
      _
    %1011 = vsyncpa [#allocation3], 1
    %s1012 = scalar_lea.sflag [#allocation3], 1
    %1013 = vsyncpa %s1012, 1

</llo_original>
